<compile_context>
chip_gen: v5e
topology: v5e:2x2
jax: 0.10.0
libtpu: 0.0.40
codegen_flags: <defaults>
</compile_context>

<pallas_src>
import jax
import jax.numpy as jnp
from jax.experimental import pallas as pl
from jax.experimental.pallas import tpu as pltpu


def _sublayer_connection_kernel(x_ref, w_ref, bias_ref, gamma_ref, beta_ref, o_ref):
    eps = 1e-6
    x = x_ref[...].astype(jnp.float32)               # (TM, D)
    d = x.shape[-1]

    # ---- LayerNorm (torch.std is unbiased: divide by N-1; denom is std + eps) ----
    mean = jnp.mean(x, axis=-1, keepdims=True)
    diff = x - mean
    var_unbiased = jnp.sum(diff * diff, axis=-1, keepdims=True) * jnp.float32(1.0 / (d - 1))
    std = jnp.sqrt(var_unbiased)
    inv = pl.reciprocal(std + eps, approx=True)       # per-row scalar, EUP slot
    normed = (diff * inv) * gamma_ref[...] + beta_ref[...]          # (TM, D), f32

    # ---- sublayer: Linear(D, D) on the MXU, bf16 operands / f32 accumulation ----
    y = jnp.dot(normed.astype(jnp.bfloat16), w_ref[...],
                preferred_element_type=jnp.float32) + bias_ref[...]

    # ---- dropout (eval mode => identity) + residual ----
    o_ref[...] = x + y


def sublayer_connection(x, w, bias, gamma, beta, *, row_tile=256,
                        vmem_limit_bytes=56 * 1024 * 1024):
    """x: (B, S, D) float32.  w: (D, D) (cast to bf16).  Returns (B, S, D) float32."""
    B, S, D = x.shape
    R = B * S
    x2 = x.reshape(R, D).astype(jnp.float32)

    # Clamp tile to the available rows (multiple of 8), pad rows if needed.
    row_tile = min(row_tile, max(8, ((R + 7) // 8) * 8))
    row_tile = max(8, (row_tile // 8) * 8)
    R_pad = pl.cdiv(R, row_tile) * row_tile
    if R_pad != R:
        x2 = jnp.pad(x2, ((0, R_pad - R), (0, 0)))

    w_bf16 = w.astype(jnp.bfloat16)                   # bf16 weight: MXU-native, half the DMA bytes
    bias2 = bias.reshape(1, D).astype(jnp.float32)
    gamma2 = gamma.reshape(1, D).astype(jnp.float32)
    beta2 = beta.reshape(1, D).astype(jnp.float32)

    grid = (R_pad // row_tile,)

    cost = pl.CostEstimate(
        flops=2 * R_pad * D * D,
        transcendentals=2 * R_pad,                    # sqrt + reciprocal per row
        bytes_accessed=2 * R_pad * D * 4 + D * D * 2 + 3 * D * 4,
    )

    resident_vmem = pl.BlockSpec(memory_space=pltpu.MemorySpace.VMEM)  # grid-invariant, no double buffer

    out = pl.pallas_call(
        _sublayer_connection_kernel,
        out_shape=jax.ShapeDtypeStruct((R_pad, D), jnp.float32),
        grid_spec=pltpu.PrefetchScalarGridSpec(
            num_scalar_prefetch=0,
            grid=grid,
            in_specs=[
                pl.BlockSpec((row_tile, D), lambda i: (i, 0)),   # x rows (pipelined)
                resident_vmem,                                    # weight (bf16, resident)
                resident_vmem,                                    # bias
                resident_vmem,                                    # gamma (a_2)
                resident_vmem,                                    # beta  (b_2)
            ],
            out_specs=pl.BlockSpec((row_tile, D), lambda i: (i, 0)),
        ),
        compiler_params=pltpu.CompilerParams(
            dimension_semantics=("parallel",),
            vmem_limit_bytes=vmem_limit_bytes,
        ),
        cost_estimate=cost,
    )(x2, w_bf16, bias2, gamma2, beta2)

    return out[:R].reshape(B, S, D)


def reference(x, w, bias, gamma, beta, eps=1e-6):
    """Pure-JAX reference with the same bf16 matmul-operand rounding as the kernel."""
    x = x.astype(jnp.float32)
    d = x.shape[-1]
    mean = jnp.mean(x, axis=-1, keepdims=True)
    diff = x - mean
    std = jnp.sqrt(jnp.sum(diff * diff, axis=-1, keepdims=True) / (d - 1))
    normed = gamma * diff / (std + eps) + beta
    normed_bf16 = normed.astype(jnp.bfloat16).astype(jnp.float32)
    w_bf16 = w.astype(jnp.bfloat16).astype(jnp.float32)
    y = jnp.einsum("bsd,de->bse", normed_bf16, w_bf16,
                   preferred_element_type=jnp.float32) + bias
    return x + y


if __name__ == "__main__":
    B, S, D = 4, 128, 128          # small but lane-dense (D multiple of 128); R=512 -> grid of 2
    key = jax.random.PRNGKey(0)
    kx, kw, kb = jax.random.split(key, 3)

    x = jax.random.normal(kx, (B, S, D), dtype=jnp.float32)

    # LayerNorm params per module __init__: a_2 = ones, b_2 = zeros
    gamma = jnp.ones((D,), dtype=jnp.float32)
    beta = jnp.zeros((D,), dtype=jnp.float32)

    # Deterministic synthetic sublayer (Linear(D, D)) parameters.
    w = jax.random.normal(kw, (D, D), dtype=jnp.float32) * (1.0 / jnp.sqrt(D))
    bias = jax.random.normal(kb, (D,), dtype=jnp.float32) * 0.01

    out = sublayer_connection(x, w, bias, gamma, beta)
    out = jax.block_until_ready(out)

    ref = reference(x, w, bias, gamma, beta)
    assert out.shape == (B, S, D)
    # Tolerance accounts for bf16 matmul operands + approx (EUP) reciprocal in the LN scale.
    assert jnp.allclose(out, ref, atol=2e-2, rtol=2e-2), "mismatch vs reference"

    print("KERNEL_OK")
</pallas_src>

<mosaic_0001>
module attributes {stable_mosaic.version = 11 : i64} {
  func.func @_sublayer_connection_kernel(%arg0: i32, %arg1: memref<256x128xf32, #tpu.memory_space<vmem>>, %arg2: memref<128x128xbf16, #tpu.memory_space<vmem>>, %arg3: memref<1x128xf32, #tpu.memory_space<vmem>>, %arg4: memref<1x128xf32, #tpu.memory_space<vmem>>, %arg5: memref<1x128xf32, #tpu.memory_space<vmem>>, %arg6: memref<256x128xf32, #tpu.memory_space<vmem>>) attributes {dimension_semantics = [#tpu.dimension_semantics<parallel>], iteration_bounds = array<i64: 2>, scalar_prefetch = 0 : i64, scratch_operands = 0 : i64, tpu.core_type = #tpu.core_type<tc>, window_params = [{transform_indices = @transform_0, window_bounds = array<i64: 256, 128>}, {pipeline_mode = #tpu.pipeline_mode<synchronous>, transform_indices = @transform_1, window_bounds = array<i64: 128, 128>}, {pipeline_mode = #tpu.pipeline_mode<synchronous>, transform_indices = @transform_2, window_bounds = array<i64: 1, 128>}, {pipeline_mode = #tpu.pipeline_mode<synchronous>, transform_indices = @transform_3, window_bounds = array<i64: 1, 128>}, {pipeline_mode = #tpu.pipeline_mode<synchronous>, transform_indices = @transform_4, window_bounds = array<i64: 1, 128>}, {transform_indices = @transform_5, window_bounds = array<i64: 256, 128>}]} {
    %c0 = arith.constant 0 : index
    %c0_0 = arith.constant 0 : index
    %0 = vector.load %arg1[%c0, %c0_0] : memref<256x128xf32, #tpu.memory_space<vmem>>, vector<256x128xf32>
    %cst = arith.constant dense<0.000000e+00> : vector<256xf32>
    %1 = vector.multi_reduction <add>, %0, %cst [1] : vector<256x128xf32> to vector<256xf32>
    %2 = vector.shape_cast %1 : vector<256xf32> to vector<256x1xf32>
    %cst_1 = arith.constant 1.280000e+02 : f32
    %3 = vector.broadcast %cst_1 : f32 to vector<256x1xf32>
    %4 = arith.divf %2, %3 : vector<256x1xf32>
    %5 = vector.broadcast %4 : vector<256x1xf32> to vector<256x128xf32>
    %6 = arith.subf %0, %5 : vector<256x128xf32>
    %7 = arith.mulf %6, %6 : vector<256x128xf32>
    %cst_2 = arith.constant dense<0.000000e+00> : vector<256xf32>
    %8 = vector.multi_reduction <add>, %7, %cst_2 [1] : vector<256x128xf32> to vector<256xf32>
    %9 = vector.shape_cast %8 : vector<256xf32> to vector<256x1xf32>
    %cst_3 = arith.constant 0.00787401571 : f32
    %10 = vector.broadcast %cst_3 : f32 to vector<256x1xf32>
    %11 = arith.mulf %9, %10 : vector<256x1xf32>
    %12 = math.sqrt %11 : vector<256x1xf32>
    %cst_4 = arith.constant 9.99999997E-7 : f32
    %13 = vector.broadcast %cst_4 : f32 to vector<256x1xf32>
    %14 = arith.addf %12, %13 : vector<256x1xf32>
    %15 = tpu.reciprocal %14 {approx = true} : vector<256x1xf32> -> vector<256x1xf32>
    %16 = vector.broadcast %15 : vector<256x1xf32> to vector<256x128xf32>
    %17 = arith.mulf %6, %16 : vector<256x128xf32>
    %c0_5 = arith.constant 0 : index
    %c0_6 = arith.constant 0 : index
    %18 = vector.load %arg4[%c0_5, %c0_6] : memref<1x128xf32, #tpu.memory_space<vmem>>, vector<1x128xf32>
    %19 = vector.broadcast %18 : vector<1x128xf32> to vector<256x128xf32>
    %20 = arith.mulf %17, %19 : vector<256x128xf32>
    %c0_7 = arith.constant 0 : index
    %c0_8 = arith.constant 0 : index
    %21 = vector.load %arg5[%c0_7, %c0_8] : memref<1x128xf32, #tpu.memory_space<vmem>>, vector<1x128xf32>
    %22 = vector.broadcast %21 : vector<1x128xf32> to vector<256x128xf32>
    %23 = arith.addf %20, %22 : vector<256x128xf32>
    %24 = arith.truncf %23 : vector<256x128xf32> to vector<256x128xbf16>
    %c0_9 = arith.constant 0 : index
    %c0_10 = arith.constant 0 : index
    %25 = vector.load %arg2[%c0_9, %c0_10] : memref<128x128xbf16, #tpu.memory_space<vmem>>, vector<128x128xbf16>
    %cst_11 = arith.constant dense<0.000000e+00> : vector<256x128xf32>
    %26 = tpu.matmul %24, %25, %cst_11 {dimension_numbers = #tpu.dot_dimension_numbers<[1], [0], [0], [1], [0, 0, 1, 1], [], []>} : vector<256x128xbf16>, vector<128x128xbf16>, vector<256x128xf32> -> vector<256x128xf32>
    %c0_12 = arith.constant 0 : index
    %c0_13 = arith.constant 0 : index
    %27 = vector.load %arg3[%c0_12, %c0_13] : memref<1x128xf32, #tpu.memory_space<vmem>>, vector<1x128xf32>
    %28 = vector.broadcast %27 : vector<1x128xf32> to vector<256x128xf32>
    %29 = arith.addf %26, %28 : vector<256x128xf32>
    %30 = arith.addf %0, %29 : vector<256x128xf32>
    %c0_14 = arith.constant 0 : index
    %c0_15 = arith.constant 0 : index
    %31 = vector.load %arg6[%c0_14, %c0_15] : memref<256x128xf32, #tpu.memory_space<vmem>>, vector<256x128xf32>
    tpu.vector_store %arg6[%c0_14, %c0_15], %30 {strides = array<i32>} : memref<256x128xf32, #tpu.memory_space<vmem>>, vector<256x128xf32>,
    return
  }
  func.func @transform_0(%arg0: i32) -> (i32, i32) {
    %c0_i32 = arith.constant 0 : i32
    %c0_i32_0 = arith.constant 0 : i32
    return %arg0, %c0_i32 : i32, i32
  }
  func.func @transform_1(%arg0: i32) -> (i32, i32) {
    %c0_i32 = arith.constant 0 : i32
    %c0_i32_0 = arith.constant 0 : i32
    %c0_i32_1 = arith.constant 0 : i32
    return %c0_i32, %c0_i32_0 : i32, i32
  }
  func.func @transform_2(%arg0: i32) -> (i32, i32) {
    %c0_i32 = arith.constant 0 : i32
    %c0_i32_0 = arith.constant 0 : i32
    %c0_i32_1 = arith.constant 0 : i32
    return %c0_i32, %c0_i32_0 : i32, i32
  }
  func.func @transform_3(%arg0: i32) -> (i32, i32) {
    %c0_i32 = arith.constant 0 : i32
    %c0_i32_0 = arith.constant 0 : i32
    %c0_i32_1 = arith.constant 0 : i32
    return %c0_i32, %c0_i32_0 : i32, i32
  }
  func.func @transform_4(%arg0: i32) -> (i32, i32) {
    %c0_i32 = arith.constant 0 : i32
    %c0_i32_0 = arith.constant 0 : i32
    %c0_i32_1 = arith.constant 0 : i32
    return %c0_i32, %c0_i32_0 : i32, i32
  }
  func.func @transform_5(%arg0: i32) -> (i32, i32) {
    %c0_i32 = arith.constant 0 : i32
    %c0_i32_0 = arith.constant 0 : i32
    return %arg0, %c0_i32 : i32, i32
  }
}

</mosaic_0001>

<llo_original>
// kernel: tpu_custom_call.1
$region0: #{tpu_custom_call.1}
  #allocation0 [shape = 'u32[]', space=smem, size = 0x4, offset = 0x4, fixed_abs, tag = 'smem constant byte address 0x4 - core index']
  #allocation1 [shape = 'u32[72,128]{1,0:T(1,128)}', space=vmem, size = 0x9000, scoped, tag = 'internal scratch']
  %s0 = inlined_call_operand.hbm [shape: f32[512,128], index: 0, kind: input, shape index: {}]
  %s1 = inlined_call_operand.hbm [shape: bf16[128,128], index: 1, kind: input, shape index: {}]
  %s2 = inlined_call_operand.vmem [shape: f32[1,128], index: 2, kind: input, shape index: {}]
  %s3 = inlined_call_operand.vmem [shape: f32[1,128], index: 3, kind: input, shape index: {}]
  %s4 = inlined_call_operand.vmem [shape: f32[1,128], index: 4, kind: input, shape index: {}]
  %s5 = inlined_call_operand.hbm [shape: f32[512,128], index: 5, kind: output, shape index: {}]
  %s6 = sld [smem:[#allocation0]]
  $region61: #{tpu_custom_call.1} parent=0
    _
  %s8 = ssub.s32 1, %s6
  %s9 = scalar_select 0, %s8, %s6
  $region1: #{tpu_custom_call.1} parent=0
    #allocation2 [shape = 'u8[262144]{0}', space=vmem, size = 0x40000, scoped, tag = 'input window, operand 0']
    #allocation3 [shape = 's32[2]{0}', space=sflag, size = 0x8, scoped, tag = 'scoped memory for tpu_custom_call.1']
    #allocation4 [shape = 's32[2]{0}', space=sflag, size = 0x8, scoped, tag = 'scoped memory for tpu_custom_call.1']
    #allocation5 [shape = 'u8[32768]{0}', space=vmem, size = 0x8000, scoped, tag = 'input window, operand 1, single buffered']
    #allocation6 [shape = 's32[1]{0}', space=sflag, size = 0x4, scoped, tag = 'scoped memory for tpu_custom_call.1']
    #allocation7 [shape = 'u8[262144]{0}', space=vmem, size = 0x40000, scoped, tag = 'output window, operand 0']
    %10 = vsyncpa [#allocation3], 0
    %s11 = scalar_lea.sflag [#allocation3], 1
    %12 = vsyncpa %s11, 0
    %13 = vsyncpa [#allocation6], 0
    %14 = vsyncpa [#allocation4], 0
    %s15 = scalar_lea.sflag [#allocation4], 1
    %16 = vsyncpa %s15, 0
    loop: start=0, step=1, limit=4
    $region2: #{tpu_custom_call.1} parent=1 // loop_pre_header
      _
    $region3: #{tpu_custom_call.1} parent=1 // loop_header
      %s18 = sphi 0, %s22
      %p19 = scmp.ge.s32.totalorder %s18, 4
      %s28 = sphi 0, %s30
      %s31 = sphi 0, %s28
      %s32 = sphi 0, %s31
      %s48 = sphi 0, %s32
      %s52 = sphi 0, %s52
      %s54 = sphi 0, %s52
      %s55 = sphi 0, %s54
      %s69 = sphi 0, %s55
      %s73 = sphi 0, %s73
      %s75 = sphi 0, %s73
      %s76 = sphi 0, %s75
      %s90 = sphi 0, %s76
      %s94 = sphi 0, %s94
      %s96 = sphi 0, %s94
      %s97 = sphi 0, %s96
      %s111 = sphi 0, %s97
      %s115 = sphi 0, %s115
      %s117 = sphi 0, %s115
      %s118 = sphi 0, %s117
      %s132 = sphi 0, %s118
      %s138 = sphi 0, %s140
      %s141 = sphi 0, %s138
      %s142 = sphi 0, %s141
      %s158 = sphi 0, %s142
    $region4: #{tpu_custom_call.1} parent=1 // loop_header_branch
      %21 = sbr.rel (%p19) target = $region8
    $region5: #{tpu_custom_call.1} parent=1 // loop_body
      %s23 = ssub.s32 %s18, 1
      %s24 = ssub.s32 %s18, 2
      %s25 = sadd.s32 %s18, 1
      %s26 = ssub.s32 %s18, %s25
      %p27 = scmp.eq.s32.totalorder %s26, 0
      %s29 = sadd.s32 %s28, 1
      %s30 = scalar_select %p27, %s28, %s29
      %p33 = pneg %p27
      %p34 = scmp.eq.s32.totalorder %s18, 1
      %p35 = por %p33, %p34
      %p36 = scmp.ne.s32.totalorder %s28, %s31
      %p37 = scmp.eq.s32.totalorder %s18, 0
      %p38 = por %p36, %p37
      %p39 = scmp.ne.s32.totalorder %s28, %s31
      %p40 = scmp.eq.s32.totalorder %s23, 1
      %p41 = por %p39, %p40
      %p42 = scmp.ne.s32.totalorder %s31, %s32
      %p43 = scmp.eq.s32.totalorder %s23, 0
      %p44 = por %p42, %p43
      %p45 = scmp.ne.s32.totalorder %s31, %s32
      %p46 = scmp.eq.s32.totalorder %s24, 1
      %p47 = por %p45, %p46
      %p49 = scmp.ne.s32.totalorder %s32, %s48
      %p50 = scmp.eq.s32.totalorder %s24, 0
      %p51 = por %p49, %p50
      %s53 = sadd.s32 %s52, 1
      %p56 = scmp.eq.s32.totalorder %s18, 1
      %p57 = scmp.ne.s32.totalorder %s52, %s54
      %p58 = scmp.eq.s32.totalorder %s18, 0
      %p59 = por %p57, %p58
      %p60 = scmp.ne.s32.totalorder %s52, %s54
      %p61 = scmp.eq.s32.totalorder %s23, 1
      %p62 = por %p60, %p61
      %p63 = scmp.ne.s32.totalorder %s54, %s55
      %p64 = scmp.eq.s32.totalorder %s23, 0
      %p65 = por %p63, %p64
      %p66 = scmp.ne.s32.totalorder %s54, %s55
      %p67 = scmp.eq.s32.totalorder %s24, 1
      %p68 = por %p66, %p67
      %p70 = scmp.ne.s32.totalorder %s55, %s69
      %p71 = scmp.eq.s32.totalorder %s24, 0
      %p72 = por %p70, %p71
      %s74 = sadd.s32 %s73, 1
      %p77 = scmp.eq.s32.totalorder %s18, 1
      %p78 = scmp.ne.s32.totalorder %s73, %s75
      %p79 = scmp.eq.s32.totalorder %s18, 0
      %p80 = por %p78, %p79
      %p81 = scmp.ne.s32.totalorder %s73, %s75
      %p82 = scmp.eq.s32.totalorder %s23, 1
      %p83 = por %p81, %p82
      %p84 = scmp.ne.s32.totalorder %s75, %s76
      %p85 = scmp.eq.s32.totalorder %s23, 0
      %p86 = por %p84, %p85
      %p87 = scmp.ne.s32.totalorder %s75, %s76
      %p88 = scmp.eq.s32.totalorder %s24, 1
      %p89 = por %p87, %p88
      %p91 = scmp.ne.s32.totalorder %s76, %s90
      %p92 = scmp.eq.s32.totalorder %s24, 0
      %p93 = por %p91, %p92
      %s95 = sadd.s32 %s94, 1
      %p98 = scmp.eq.s32.totalorder %s18, 1
      %p99 = scmp.ne.s32.totalorder %s94, %s96
      %p100 = scmp.eq.s32.totalorder %s18, 0
      %p101 = por %p99, %p100
      %p102 = scmp.ne.s32.totalorder %s94, %s96
      %p103 = scmp.eq.s32.totalorder %s23, 1
      %p104 = por %p102, %p103
      %p105 = scmp.ne.s32.totalorder %s96, %s97
      %p106 = scmp.eq.s32.totalorder %s23, 0
      %p107 = por %p105, %p106
      %p108 = scmp.ne.s32.totalorder %s96, %s97
      %p109 = scmp.eq.s32.totalorder %s24, 1
      %p110 = por %p108, %p109
      %p112 = scmp.ne.s32.totalorder %s97, %s111
      %p113 = scmp.eq.s32.totalorder %s24, 0
      %p114 = por %p112, %p113
      %s116 = sadd.s32 %s115, 1
      %p119 = scmp.eq.s32.totalorder %s18, 1
      %p120 = scmp.ne.s32.totalorder %s115, %s117
      %p121 = scmp.eq.s32.totalorder %s18, 0
      %p122 = por %p120, %p121
      %p123 = scmp.ne.s32.totalorder %s115, %s117
      %p124 = scmp.eq.s32.totalorder %s23, 1
      %p125 = por %p123, %p124
      %p126 = scmp.ne.s32.totalorder %s117, %s118
      %p127 = scmp.eq.s32.totalorder %s23, 0
      %p128 = por %p126, %p127
      %p129 = scmp.ne.s32.totalorder %s117, %s118
      %p130 = scmp.eq.s32.totalorder %s24, 1
      %p131 = por %p129, %p130
      %p133 = scmp.ne.s32.totalorder %s118, %s132
      %p134 = scmp.eq.s32.totalorder %s24, 0
      %p135 = por %p133, %p134
      %s136 = ssub.s32 %s18, %s25
      %p137 = scmp.eq.s32.totalorder %s136, 0
      %s139 = sadd.s32 %s138, 1
      %s140 = scalar_select %p137, %s138, %s139
      %p143 = pneg %p137
      %p144 = scmp.eq.s32.totalorder %s18, 1
      %p145 = por %p143, %p144
      %p146 = scmp.ne.s32.totalorder %s138, %s141
      %p147 = scmp.eq.s32.totalorder %s18, 0
      %p148 = por %p146, %p147
      %p149 = scmp.ne.s32.totalorder %s138, %s141
      %p150 = scmp.eq.s32.totalorder %s23, 1
      %p151 = por %p149, %p150
      %p152 = scmp.ne.s32.totalorder %s141, %s142
      %p153 = scmp.eq.s32.totalorder %s23, 0
      %p154 = por %p152, %p153
      %p155 = scmp.ne.s32.totalorder %s141, %s142
      %p156 = scmp.eq.s32.totalorder %s24, 1
      %p157 = por %p155, %p156
      %p159 = scmp.ne.s32.totalorder %s142, %s158
      %p160 = scmp.eq.s32.totalorder %s24, 0
      %p161 = por %p159, %p160
      %p162 = scmp.le.s32.totalorder 1, %s18
      %p163 = scmp.lt.s32.totalorder %s18, 3
      %p164 = pnand %p162, %p163
      %p165 = pneg %p164
      // Predicated region
      $region9: #{tpu_custom_call.1} parent=5 // pred_check
        _
      $region10: #{tpu_custom_call.1} parent=5 // pred_check_branch
        %167 = sbr.rel (%p164) target = $region12
      $region11: #{tpu_custom_call.1} parent=5 // pred_region
        %s168 = ssub.s32 %s18, 1
        // Predicated region
        $region13: #{tpu_custom_call.1} parent=11 // pred_check
          %p169 = pneg %p65
        $region14: #{tpu_custom_call.1} parent=11 // pred_check_branch
          %171 = sbr.rel (%p169) target = $region16
        $region15: #{tpu_custom_call.1} parent=11 // pred_region
          %173 = vsyncadd [#allocation6], 0
          %s174 = sshll.u32 %s1, 4
          %s175 = int_to_ptr.hbm [resolvable:$true] %s174
          %s176 = sshll.u32 [#allocation5], 4
          %s177 = int_to_ptr.vmem [resolvable:$true] %s176
          %182 = dma.hbm_to_vmem [thread:$0]  %s175, 1024, %s177, [#allocation6], 64, 64, 4
        $region16: #{tpu_custom_call.1} parent=11 // pred_fallthru
          _
        // Predicated region
        $region17: #{tpu_custom_call.1} parent=11 // pred_check
          %p183 = pneg %p86
        $region18: #{tpu_custom_call.1} parent=11 // pred_check_branch
          %185 = sbr.rel (%p183) target = $region20
        $region19: #{tpu_custom_call.1} parent=11 // pred_region
          _
        $region20: #{tpu_custom_call.1} parent=11 // pred_fallthru
          _
        // Predicated region
        $region21: #{tpu_custom_call.1} parent=11 // pred_check
          %p186 = pneg %p107
        $region22: #{tpu_custom_call.1} parent=11 // pred_check_branch
          %188 = sbr.rel (%p186) target = $region24
        $region23: #{tpu_custom_call.1} parent=11 // pred_region
          _
        $region24: #{tpu_custom_call.1} parent=11 // pred_fallthru
          _
        // Predicated region
        $region25: #{tpu_custom_call.1} parent=11 // pred_check
          %p189 = pneg %p128
        $region26: #{tpu_custom_call.1} parent=11 // pred_check_branch
          %191 = sbr.rel (%p189) target = $region28
        $region27: #{tpu_custom_call.1} parent=11 // pred_region
          _
        $region28: #{tpu_custom_call.1} parent=11 // pred_fallthru
          _
      $region12: #{tpu_custom_call.1} parent=5 // pred_fallthru
        _
      %p192 = scmp.lt.s32.totalorder %s18, 2
      // Predicated region
      $region29: #{tpu_custom_call.1} parent=5 // pred_check
        %p193 = pneg %p192
      $region30: #{tpu_custom_call.1} parent=5 // pred_check_branch
        %195 = sbr.rel (%p193) target = $region32
      $region31: #{tpu_custom_call.1} parent=5 // pred_region
        // Predicated region
        $region33: #{tpu_custom_call.1} parent=31 // pred_check
          %p196 = pneg %p38
        $region34: #{tpu_custom_call.1} parent=31 // pred_check_branch
          %198 = sbr.rel (%p196) target = $region36
        $region35: #{tpu_custom_call.1} parent=31 // pred_region
          %s199 = sand.u32 %s28, 1
          %s200 = scalar_lea.sflag [#allocation3], %s199
          %s201 = sand.u32 %s28, 1
          %s202 = smul.addr %s201, 256
          %s203 = scalar_lea.vmem [#allocation2], %s202
          %s204 = smul.u32 32, %s18
          %206 = vsyncadd %s200, 0
          %s207 = smul.addr %s204, 8
          %s208 = scalar_lea.hbm %s0, %s207
          %s209 = sshll.u32 %s208, 4
          %s210 = int_to_ptr.hbm [resolvable:$true] %s209
          %s211 = sshll.u32 %s203, 4
          %s212 = int_to_ptr.vmem [resolvable:$true] %s211
          %217 = dma.hbm_to_vmem [thread:$0]  %s210, 4096, %s212, %s200, 128, 128, 8
        $region36: #{tpu_custom_call.1} parent=31 // pred_fallthru
          _
      $region32: #{tpu_custom_call.1} parent=5 // pred_fallthru
        _
      %p218 = scmp.le.s32.totalorder 1, %s18
      %p219 = scmp.lt.s32.totalorder %s18, 3
      %p220 = pnand %p218, %p219
      %p221 = pneg %p220
      // Predicated region
      $region37: #{tpu_custom_call.1} parent=5 // pred_check
        _
      $region38: #{tpu_custom_call.1} parent=5 // pred_check_branch
        %223 = sbr.rel (%p220) target = $region40
      $region39: #{tpu_custom_call.1} parent=5 // pred_region
        %s224 = ssub.s32 %s18, 1
        %s225 = sand.u32 %s31, 1
        %s226 = scalar_lea.sflag [#allocation3], %s225
        %s227 = sand.u32 %s31, 1
        %s228 = smul.addr %s227, 256
        %s229 = scalar_lea.vmem [#allocation2], %s228
        // Predicated region
        $region41: #{tpu_custom_call.1} parent=39 // pred_check
          %p230 = pneg %p44
        $region42: #{tpu_custom_call.1} parent=39 // pred_check_branch
          %232 = sbr.rel (%p230) target = $region44
        $region43: #{tpu_custom_call.1} parent=39 // pred_region
          %234 = dma.done %s226, 4096
        $region44: #{tpu_custom_call.1} parent=39 // pred_fallthru
          _
        // Predicated region
        $region45: #{tpu_custom_call.1} parent=39 // pred_check
          %p235 = pneg %p65
        $region46: #{tpu_custom_call.1} parent=39 // pred_check_branch
          %237 = sbr.rel (%p235) target = $region48
        $region47: #{tpu_custom_call.1} parent=39 // pred_region
          %239 = dma.done [#allocation6], 1024
        $region48: #{tpu_custom_call.1} parent=39 // pred_fallthru
          _
        %s240 = sand.u32 %s31, 1
        %s241 = scalar_lea.sflag [#allocation3], %s240
        %s242 = sand.u32 %s31, 1
        %s243 = smul.addr %s242, 256
        %s244 = scalar_lea.vmem [#allocation2], %s243
        %p245 = pneg %p44
        %p246 = pneg %p41
        %p247 = pneg %p65
        %p248 = pneg %p62
        %p249 = pneg %p86
        %p250 = pneg %p83
        %p251 = pneg %p107
        %p252 = pneg %p104
        %p253 = pneg %p128
        %p254 = pneg %p125
        %p255 = pneg %p154
        %p256 = pneg %p151
        %s257 = sand.u32 %s141, 1
        %s258 = scalar_lea.sflag [#allocation4], %s257
        %s259 = sand.u32 %s141, 1
        %s260 = smul.addr %s259, 256
        %s261 = scalar_lea.vmem [#allocation7], %s260
        %s262 = smul.u32 32, %s23
        %s263 = smul.u32 32, %s23
        %v264 = vld [vmem:[%s229] sm:$0xff]
        %v265 = vld [vmem:[%s229 + $0x8] sm:$0xff]
        %v266 = vld [vmem:[%s229 + $0x10] sm:$0xff]
        %v267 = vld [vmem:[%s229 + $0x18] sm:$0xff]
        %v268 = vld [vmem:[%s229 + $0x20] sm:$0xff]
        %v269 = vld [vmem:[%s229 + $0x28] sm:$0xff]
        %v270 = vld [vmem:[%s229 + $0x30] sm:$0xff]
        %v271 = vld [vmem:[%s229 + $0x38] sm:$0xff]
        %v272 = vld [vmem:[%s229 + $0x40] sm:$0xff]
        %v273 = vld [vmem:[%s229 + $0x48] sm:$0xff]
        %v274 = vld [vmem:[%s229 + $0x50] sm:$0xff]
        %v275 = vld [vmem:[%s229 + $0x58] sm:$0xff]
        %v276 = vld [vmem:[%s229 + $0x60] sm:$0xff]
        %v277 = vld [vmem:[%s229 + $0x68] sm:$0xff]
        %v278 = vld [vmem:[%s229 + $0x70] sm:$0xff]
        %v279 = vld [vmem:[%s229 + $0x78] sm:$0xff]
        %v280 = vld [vmem:[%s229 + $0x80] sm:$0xff]
        %v281 = vld [vmem:[%s229 + $0x88] sm:$0xff]
        %v282 = vld [vmem:[%s229 + $0x90] sm:$0xff]
        %v283 = vld [vmem:[%s229 + $0x98] sm:$0xff]
        %v284 = vld [vmem:[%s229 + $0xa0] sm:$0xff]
        %v285 = vld [vmem:[%s229 + $0xa8] sm:$0xff]
        %v286 = vld [vmem:[%s229 + $0xb0] sm:$0xff]
        %v287 = vld [vmem:[%s229 + $0xb8] sm:$0xff]
        %v288 = vld [vmem:[%s229 + $0xc0] sm:$0xff]
        %v289 = vld [vmem:[%s229 + $0xc8] sm:$0xff]
        %v290 = vld [vmem:[%s229 + $0xd0] sm:$0xff]
        %v291 = vld [vmem:[%s229 + $0xd8] sm:$0xff]
        %v292 = vld [vmem:[%s229 + $0xe0] sm:$0xff]
        %v293 = vld [vmem:[%s229 + $0xe8] sm:$0xff]
        %v294 = vld [vmem:[%s229 + $0xf0] sm:$0xff]
        %v295 = vld [vmem:[%s229 + $0xf8] sm:$0xff]
        %296 = vadd.xlane.f32.xlu0 %v264
        %v297 = vpop.xlane.xlu0 %296
        %298 = vadd.xlane.f32.xlu0 %v265
        %v299 = vpop.xlane.xlu0 %298
        %300 = vadd.xlane.f32.xlu0 %v266
        %v301 = vpop.xlane.xlu0 %300
        %302 = vadd.xlane.f32.xlu0 %v267
        %v303 = vpop.xlane.xlu0 %302
        %304 = vadd.xlane.f32.xlu0 %v268
        %v305 = vpop.xlane.xlu0 %304
        %306 = vadd.xlane.f32.xlu0 %v269
        %v307 = vpop.xlane.xlu0 %306
        %308 = vadd.xlane.f32.xlu0 %v270
        %v309 = vpop.xlane.xlu0 %308
        %310 = vadd.xlane.f32.xlu0 %v271
        %v311 = vpop.xlane.xlu0 %310
        %312 = vadd.xlane.f32.xlu0 %v272
        %v313 = vpop.xlane.xlu0 %312
        %314 = vadd.xlane.f32.xlu0 %v273
        %v315 = vpop.xlane.xlu0 %314
        %316 = vadd.xlane.f32.xlu0 %v274
        %v317 = vpop.xlane.xlu0 %316
        %318 = vadd.xlane.f32.xlu0 %v275
        %v319 = vpop.xlane.xlu0 %318
        %320 = vadd.xlane.f32.xlu0 %v276
        %v321 = vpop.xlane.xlu0 %320
        %322 = vadd.xlane.f32.xlu0 %v277
        %v323 = vpop.xlane.xlu0 %322
        %324 = vadd.xlane.f32.xlu0 %v278
        %v325 = vpop.xlane.xlu0 %324
        %326 = vadd.xlane.f32.xlu0 %v279
        %v327 = vpop.xlane.xlu0 %326
        %328 = vadd.xlane.f32.xlu0 %v280
        %v329 = vpop.xlane.xlu0 %328
        %330 = vadd.xlane.f32.xlu0 %v281
        %v331 = vpop.xlane.xlu0 %330
        %332 = vadd.xlane.f32.xlu0 %v282
        %v333 = vpop.xlane.xlu0 %332
        %334 = vadd.xlane.f32.xlu0 %v283
        %v335 = vpop.xlane.xlu0 %334
        %336 = vadd.xlane.f32.xlu0 %v284
        %v337 = vpop.xlane.xlu0 %336
        %338 = vadd.xlane.f32.xlu0 %v285
        %v339 = vpop.xlane.xlu0 %338
        %340 = vadd.xlane.f32.xlu0 %v286
        %v341 = vpop.xlane.xlu0 %340
        %342 = vadd.xlane.f32.xlu0 %v287
        %v343 = vpop.xlane.xlu0 %342
        %344 = vadd.xlane.f32.xlu0 %v288
        %v345 = vpop.xlane.xlu0 %344
        %346 = vadd.xlane.f32.xlu0 %v289
        %v347 = vpop.xlane.xlu0 %346
        %348 = vadd.xlane.f32.xlu0 %v290
        %v349 = vpop.xlane.xlu0 %348
        %350 = vadd.xlane.f32.xlu0 %v291
        %v351 = vpop.xlane.xlu0 %350
        %352 = vadd.xlane.f32.xlu0 %v292
        %v353 = vpop.xlane.xlu0 %352
        %354 = vadd.xlane.f32.xlu0 %v293
        %v355 = vpop.xlane.xlu0 %354
        %356 = vadd.xlane.f32.xlu0 %v294
        %v357 = vpop.xlane.xlu0 %356
        %358 = vadd.xlane.f32.xlu0 %v295
        %v359 = vpop.xlane.xlu0 %358
        %v360 = vrcp.pop 128.0
        %v361 = vmul.f32 128.0, %v360
        %v362 = vsub.f32 1.0, %v361
        %v363 = vmul.f32 %v360, %v362
        %v364 = vadd.f32 %v360, %v363
        %vm365 = vweird.f32 %v360
        %v366 = vsel %vm365, %v360, %v364
        %v367 = vmul.f32 %v297, %v366
        %v368 = vmul.f32 %v299, %v366
        %v369 = vmul.f32 %v301, %v366
        %v370 = vmul.f32 %v303, %v366
        %v371 = vmul.f32 %v305, %v366
        %v372 = vmul.f32 %v307, %v366
        %v373 = vmul.f32 %v309, %v366
        %v374 = vmul.f32 %v311, %v366
        %v375 = vmul.f32 %v313, %v366
        %v376 = vmul.f32 %v315, %v366
        %v377 = vmul.f32 %v317, %v366
        %v378 = vmul.f32 %v319, %v366
        %v379 = vmul.f32 %v321, %v366
        %v380 = vmul.f32 %v323, %v366
        %v381 = vmul.f32 %v325, %v366
        %v382 = vmul.f32 %v327, %v366
        %v383 = vmul.f32 %v329, %v366
        %v384 = vmul.f32 %v331, %v366
        %v385 = vmul.f32 %v333, %v366
        %v386 = vmul.f32 %v335, %v366
        %v387 = vmul.f32 %v337, %v366
        %v388 = vmul.f32 %v339, %v366
        %v389 = vmul.f32 %v341, %v366
        %v390 = vmul.f32 %v343, %v366
        %v391 = vmul.f32 %v345, %v366
        %v392 = vmul.f32 %v347, %v366
        %v393 = vmul.f32 %v349, %v366
        %v394 = vmul.f32 %v351, %v366
        %v395 = vmul.f32 %v353, %v366
        %v396 = vmul.f32 %v355, %v366
        %v397 = vmul.f32 %v357, %v366
        %v398 = vmul.f32 %v359, %v366
        %v399 = vsub.f32 %v264, %v367
        %v400 = vsub.f32 %v265, %v368
        %v401 = vsub.f32 %v266, %v369
        %v402 = vsub.f32 %v267, %v370
        %v403 = vsub.f32 %v268, %v371
        %v404 = vsub.f32 %v269, %v372
        %v405 = vsub.f32 %v270, %v373
        %v406 = vsub.f32 %v271, %v374
        %v407 = vsub.f32 %v272, %v375
        %v408 = vsub.f32 %v273, %v376
        %v409 = vsub.f32 %v274, %v377
        %v410 = vsub.f32 %v275, %v378
        %v411 = vsub.f32 %v276, %v379
        %v412 = vsub.f32 %v277, %v380
        %v413 = vsub.f32 %v278, %v381
        %v414 = vsub.f32 %v279, %v382
        %v415 = vsub.f32 %v280, %v383
        %v416 = vsub.f32 %v281, %v384
        %v417 = vsub.f32 %v282, %v385
        %v418 = vsub.f32 %v283, %v386
        %v419 = vsub.f32 %v284, %v387
        %v420 = vsub.f32 %v285, %v388
        %v421 = vsub.f32 %v286, %v389
        %v422 = vsub.f32 %v287, %v390
        %v423 = vsub.f32 %v288, %v391
        %v424 = vsub.f32 %v289, %v392
        %v425 = vsub.f32 %v290, %v393
        %v426 = vsub.f32 %v291, %v394
        %v427 = vsub.f32 %v292, %v395
        %v428 = vsub.f32 %v293, %v396
        %v429 = vsub.f32 %v294, %v397
        %v430 = vsub.f32 %v295, %v398
        %v431 = vmul.f32 %v399, %v399
        %v432 = vmul.f32 %v400, %v400
        %v433 = vmul.f32 %v401, %v401
        %v434 = vmul.f32 %v402, %v402
        %v435 = vmul.f32 %v403, %v403
        %v436 = vmul.f32 %v404, %v404
        %v437 = vmul.f32 %v405, %v405
        %v438 = vmul.f32 %v406, %v406
        %v439 = vmul.f32 %v407, %v407
        %v440 = vmul.f32 %v408, %v408
        %v441 = vmul.f32 %v409, %v409
        %v442 = vmul.f32 %v410, %v410
        %v443 = vmul.f32 %v411, %v411
        %v444 = vmul.f32 %v412, %v412
        %v445 = vmul.f32 %v413, %v413
        %v446 = vmul.f32 %v414, %v414
        %v447 = vmul.f32 %v415, %v415
        %v448 = vmul.f32 %v416, %v416
        %v449 = vmul.f32 %v417, %v417
        %v450 = vmul.f32 %v418, %v418
        %v451 = vmul.f32 %v419, %v419
        %v452 = vmul.f32 %v420, %v420
        %v453 = vmul.f32 %v421, %v421
        %v454 = vmul.f32 %v422, %v422
        %v455 = vmul.f32 %v423, %v423
        %v456 = vmul.f32 %v424, %v424
        %v457 = vmul.f32 %v425, %v425
        %v458 = vmul.f32 %v426, %v426
        %v459 = vmul.f32 %v427, %v427
        %v460 = vmul.f32 %v428, %v428
        %v461 = vmul.f32 %v429, %v429
        %v462 = vmul.f32 %v430, %v430
        %463 = vadd.xlane.f32.xlu0 %v431
        %v464 = vpop.xlane.xlu0 %463
        %465 = vadd.xlane.f32.xlu0 %v432
        %v466 = vpop.xlane.xlu0 %465
        %467 = vadd.xlane.f32.xlu0 %v433
        %v468 = vpop.xlane.xlu0 %467
        %469 = vadd.xlane.f32.xlu0 %v434
        %v470 = vpop.xlane.xlu0 %469
        %471 = vadd.xlane.f32.xlu0 %v435
        %v472 = vpop.xlane.xlu0 %471
        %473 = vadd.xlane.f32.xlu0 %v436
        %v474 = vpop.xlane.xlu0 %473
        %475 = vadd.xlane.f32.xlu0 %v437
        %v476 = vpop.xlane.xlu0 %475
        %477 = vadd.xlane.f32.xlu0 %v438
        %v478 = vpop.xlane.xlu0 %477
        %479 = vadd.xlane.f32.xlu0 %v439
        %v480 = vpop.xlane.xlu0 %479
        %481 = vadd.xlane.f32.xlu0 %v440
        %v482 = vpop.xlane.xlu0 %481
        %483 = vadd.xlane.f32.xlu0 %v441
        %v484 = vpop.xlane.xlu0 %483
        %485 = vadd.xlane.f32.xlu0 %v442
        %v486 = vpop.xlane.xlu0 %485
        %487 = vadd.xlane.f32.xlu0 %v443
        %v488 = vpop.xlane.xlu0 %487
        %489 = vadd.xlane.f32.xlu0 %v444
        %v490 = vpop.xlane.xlu0 %489
        %491 = vadd.xlane.f32.xlu0 %v445
        %v492 = vpop.xlane.xlu0 %491
        %493 = vadd.xlane.f32.xlu0 %v446
        %v494 = vpop.xlane.xlu0 %493
        %495 = vadd.xlane.f32.xlu0 %v447
        %v496 = vpop.xlane.xlu0 %495
        %497 = vadd.xlane.f32.xlu0 %v448
        %v498 = vpop.xlane.xlu0 %497
        %499 = vadd.xlane.f32.xlu0 %v449
        %v500 = vpop.xlane.xlu0 %499
        %501 = vadd.xlane.f32.xlu0 %v450
        %v502 = vpop.xlane.xlu0 %501
        %503 = vadd.xlane.f32.xlu0 %v451
        %v504 = vpop.xlane.xlu0 %503
        %505 = vadd.xlane.f32.xlu0 %v452
        %v506 = vpop.xlane.xlu0 %505
        %507 = vadd.xlane.f32.xlu0 %v453
        %v508 = vpop.xlane.xlu0 %507
        %509 = vadd.xlane.f32.xlu0 %v454
        %v510 = vpop.xlane.xlu0 %509
        %511 = vadd.xlane.f32.xlu0 %v455
        %v512 = vpop.xlane.xlu0 %511
        %513 = vadd.xlane.f32.xlu0 %v456
        %v514 = vpop.xlane.xlu0 %513
        %515 = vadd.xlane.f32.xlu0 %v457
        %v516 = vpop.xlane.xlu0 %515
        %517 = vadd.xlane.f32.xlu0 %v458
        %v518 = vpop.xlane.xlu0 %517
        %519 = vadd.xlane.f32.xlu0 %v459
        %v520 = vpop.xlane.xlu0 %519
        %521 = vadd.xlane.f32.xlu0 %v460
        %v522 = vpop.xlane.xlu0 %521
        %523 = vadd.xlane.f32.xlu0 %v461
        %v524 = vpop.xlane.xlu0 %523
        %525 = vadd.xlane.f32.xlu0 %v462
        %v526 = vpop.xlane.xlu0 %525
        %v527 = vmul.f32 %v464, 0.007874016
        %v528 = vmul.f32 %v466, 0.007874016
        %v529 = vmul.f32 %v468, 0.007874016
        %v530 = vmul.f32 %v470, 0.007874016
        %v531 = vmul.f32 %v472, 0.007874016
        %v532 = vmul.f32 %v474, 0.007874016
        %v533 = vmul.f32 %v476, 0.007874016
        %v534 = vmul.f32 %v478, 0.007874016
        %v535 = vmul.f32 %v480, 0.007874016
        %v536 = vmul.f32 %v482, 0.007874016
        %v537 = vmul.f32 %v484, 0.007874016
        %v538 = vmul.f32 %v486, 0.007874016
        %v539 = vmul.f32 %v488, 0.007874016
        %v540 = vmul.f32 %v490, 0.007874016
        %v541 = vmul.f32 %v492, 0.007874016
        %v542 = vmul.f32 %v494, 0.007874016
        %v543 = vmul.f32 %v496, 0.007874016
        %v544 = vmul.f32 %v498, 0.007874016
        %v545 = vmul.f32 %v500, 0.007874016
        %v546 = vmul.f32 %v502, 0.007874016
        %v547 = vmul.f32 %v504, 0.007874016
        %v548 = vmul.f32 %v506, 0.007874016
        %v549 = vmul.f32 %v508, 0.007874016
        %v550 = vmul.f32 %v510, 0.007874016
        %v551 = vmul.f32 %v512, 0.007874016
        %v552 = vmul.f32 %v514, 0.007874016
        %v553 = vmul.f32 %v516, 0.007874016
        %v554 = vmul.f32 %v518, 0.007874016
        %v555 = vmul.f32 %v520, 0.007874016
        %v556 = vmul.f32 %v522, 0.007874016
        %v557 = vmul.f32 %v524, 0.007874016
        %v558 = vmul.f32 %v526, 0.007874016
        %v559 = vrsqrt.pop %v527
        %v560 = vmul.f32 %v559, %v527
        %v561 = vmul.f32 %v560, %v559
        %v562 = vmul.f32 0.5, %v561
        %v563 = vsub.f32 1.5, %v562
        %v564 = vmul.f32 %v559, %v563
        %v565 = vmul.f32 %v527, %v564
        %vm566 = vcmp.eq.f32.partialorder %v527, inf
        %v567 = vsel %vm566, %v527, %v565
        %vm568 = vcmp.eq.f32.partialorder %v527, 0.0
        %v569 = vand.u32 %v527, 2147483648
        %v570 = vsel %vm568, %v569, %v567
        %v571 = vrsqrt.pop %v528
        %v572 = vmul.f32 %v571, %v528
        %v573 = vmul.f32 %v572, %v571
        %v574 = vmul.f32 0.5, %v573
        %v575 = vsub.f32 1.5, %v574
        %v576 = vmul.f32 %v571, %v575
        %v577 = vmul.f32 %v528, %v576
        %vm578 = vcmp.eq.f32.partialorder %v528, inf
        %v579 = vsel %vm578, %v528, %v577
        %vm580 = vcmp.eq.f32.partialorder %v528, 0.0
        %v581 = vand.u32 %v528, 2147483648
        %v582 = vsel %vm580, %v581, %v579
        %v583 = vrsqrt.pop %v529
        %v584 = vmul.f32 %v583, %v529
        %v585 = vmul.f32 %v584, %v583
        %v586 = vmul.f32 0.5, %v585
        %v587 = vsub.f32 1.5, %v586
        %v588 = vmul.f32 %v583, %v587
        %v589 = vmul.f32 %v529, %v588
        %vm590 = vcmp.eq.f32.partialorder %v529, inf
        %v591 = vsel %vm590, %v529, %v589
        %vm592 = vcmp.eq.f32.partialorder %v529, 0.0
        %v593 = vand.u32 %v529, 2147483648
        %v594 = vsel %vm592, %v593, %v591
        %v595 = vrsqrt.pop %v530
        %v596 = vmul.f32 %v595, %v530
        %v597 = vmul.f32 %v596, %v595
        %v598 = vmul.f32 0.5, %v597
        %v599 = vsub.f32 1.5, %v598
        %v600 = vmul.f32 %v595, %v599
        %v601 = vmul.f32 %v530, %v600
        %vm602 = vcmp.eq.f32.partialorder %v530, inf
        %v603 = vsel %vm602, %v530, %v601
        %vm604 = vcmp.eq.f32.partialorder %v530, 0.0
        %v605 = vand.u32 %v530, 2147483648
        %v606 = vsel %vm604, %v605, %v603
        %v607 = vrsqrt.pop %v531
        %v608 = vmul.f32 %v607, %v531
        %v609 = vmul.f32 %v608, %v607
        %v610 = vmul.f32 0.5, %v609
        %v611 = vsub.f32 1.5, %v610
        %v612 = vmul.f32 %v607, %v611
        %v613 = vmul.f32 %v531, %v612
        %vm614 = vcmp.eq.f32.partialorder %v531, inf
        %v615 = vsel %vm614, %v531, %v613
        %vm616 = vcmp.eq.f32.partialorder %v531, 0.0
        %v617 = vand.u32 %v531, 2147483648
        %v618 = vsel %vm616, %v617, %v615
        %v619 = vrsqrt.pop %v532
        %v620 = vmul.f32 %v619, %v532
        %v621 = vmul.f32 %v620, %v619
        %v622 = vmul.f32 0.5, %v621
        %v623 = vsub.f32 1.5, %v622
        %v624 = vmul.f32 %v619, %v623
        %v625 = vmul.f32 %v532, %v624
        %vm626 = vcmp.eq.f32.partialorder %v532, inf
        %v627 = vsel %vm626, %v532, %v625
        %vm628 = vcmp.eq.f32.partialorder %v532, 0.0
        %v629 = vand.u32 %v532, 2147483648
        %v630 = vsel %vm628, %v629, %v627
        %v631 = vrsqrt.pop %v533
        %v632 = vmul.f32 %v631, %v533
        %v633 = vmul.f32 %v632, %v631
        %v634 = vmul.f32 0.5, %v633
        %v635 = vsub.f32 1.5, %v634
        %v636 = vmul.f32 %v631, %v635
        %v637 = vmul.f32 %v533, %v636
        %vm638 = vcmp.eq.f32.partialorder %v533, inf
        %v639 = vsel %vm638, %v533, %v637
        %vm640 = vcmp.eq.f32.partialorder %v533, 0.0
        %v641 = vand.u32 %v533, 2147483648
        %v642 = vsel %vm640, %v641, %v639
        %v643 = vrsqrt.pop %v534
        %v644 = vmul.f32 %v643, %v534
        %v645 = vmul.f32 %v644, %v643
        %v646 = vmul.f32 0.5, %v645
        %v647 = vsub.f32 1.5, %v646
        %v648 = vmul.f32 %v643, %v647
        %v649 = vmul.f32 %v534, %v648
        %vm650 = vcmp.eq.f32.partialorder %v534, inf
        %v651 = vsel %vm650, %v534, %v649
        %vm652 = vcmp.eq.f32.partialorder %v534, 0.0
        %v653 = vand.u32 %v534, 2147483648
        %v654 = vsel %vm652, %v653, %v651
        %v655 = vrsqrt.pop %v535
        %v656 = vmul.f32 %v655, %v535
        %v657 = vmul.f32 %v656, %v655
        %v658 = vmul.f32 0.5, %v657
        %v659 = vsub.f32 1.5, %v658
        %v660 = vmul.f32 %v655, %v659
        %v661 = vmul.f32 %v535, %v660
        %vm662 = vcmp.eq.f32.partialorder %v535, inf
        %v663 = vsel %vm662, %v535, %v661
        %vm664 = vcmp.eq.f32.partialorder %v535, 0.0
        %v665 = vand.u32 %v535, 2147483648
        %v666 = vsel %vm664, %v665, %v663
        %v667 = vrsqrt.pop %v536
        %v668 = vmul.f32 %v667, %v536
        %v669 = vmul.f32 %v668, %v667
        %v670 = vmul.f32 0.5, %v669
        %v671 = vsub.f32 1.5, %v670
        %v672 = vmul.f32 %v667, %v671
        %v673 = vmul.f32 %v536, %v672
        %vm674 = vcmp.eq.f32.partialorder %v536, inf
        %v675 = vsel %vm674, %v536, %v673
        %vm676 = vcmp.eq.f32.partialorder %v536, 0.0
        %v677 = vand.u32 %v536, 2147483648
        %v678 = vsel %vm676, %v677, %v675
        %v679 = vrsqrt.pop %v537
        %v680 = vmul.f32 %v679, %v537
        %v681 = vmul.f32 %v680, %v679
        %v682 = vmul.f32 0.5, %v681
        %v683 = vsub.f32 1.5, %v682
        %v684 = vmul.f32 %v679, %v683
        %v685 = vmul.f32 %v537, %v684
        %vm686 = vcmp.eq.f32.partialorder %v537, inf
        %v687 = vsel %vm686, %v537, %v685
        %vm688 = vcmp.eq.f32.partialorder %v537, 0.0
        %v689 = vand.u32 %v537, 2147483648
        %v690 = vsel %vm688, %v689, %v687
        %v691 = vrsqrt.pop %v538
        %v692 = vmul.f32 %v691, %v538
        %v693 = vmul.f32 %v692, %v691
        %v694 = vmul.f32 0.5, %v693
        %v695 = vsub.f32 1.5, %v694
        %v696 = vmul.f32 %v691, %v695
        %v697 = vmul.f32 %v538, %v696
        %vm698 = vcmp.eq.f32.partialorder %v538, inf
        %v699 = vsel %vm698, %v538, %v697
        %vm700 = vcmp.eq.f32.partialorder %v538, 0.0
        %v701 = vand.u32 %v538, 2147483648
        %v702 = vsel %vm700, %v701, %v699
        %v703 = vrsqrt.pop %v539
        %v704 = vmul.f32 %v703, %v539
        %v705 = vmul.f32 %v704, %v703
        %v706 = vmul.f32 0.5, %v705
        %v707 = vsub.f32 1.5, %v706
        %v708 = vmul.f32 %v703, %v707
        %v709 = vmul.f32 %v539, %v708
        %vm710 = vcmp.eq.f32.partialorder %v539, inf
        %v711 = vsel %vm710, %v539, %v709
        %vm712 = vcmp.eq.f32.partialorder %v539, 0.0
        %v713 = vand.u32 %v539, 2147483648
        %v714 = vsel %vm712, %v713, %v711
        %v715 = vrsqrt.pop %v540
        %v716 = vmul.f32 %v715, %v540
        %v717 = vmul.f32 %v716, %v715
        %v718 = vmul.f32 0.5, %v717
        %v719 = vsub.f32 1.5, %v718
        %v720 = vmul.f32 %v715, %v719
        %v721 = vmul.f32 %v540, %v720
        %vm722 = vcmp.eq.f32.partialorder %v540, inf
        %v723 = vsel %vm722, %v540, %v721
        %vm724 = vcmp.eq.f32.partialorder %v540, 0.0
        %v725 = vand.u32 %v540, 2147483648
        %v726 = vsel %vm724, %v725, %v723
        %v727 = vrsqrt.pop %v541
        %v728 = vmul.f32 %v727, %v541
        %v729 = vmul.f32 %v728, %v727
        %v730 = vmul.f32 0.5, %v729
        %v731 = vsub.f32 1.5, %v730
        %v732 = vmul.f32 %v727, %v731
        %v733 = vmul.f32 %v541, %v732
        %vm734 = vcmp.eq.f32.partialorder %v541, inf
        %v735 = vsel %vm734, %v541, %v733
        %vm736 = vcmp.eq.f32.partialorder %v541, 0.0
        %v737 = vand.u32 %v541, 2147483648
        %v738 = vsel %vm736, %v737, %v735
        %v739 = vrsqrt.pop %v542
        %v740 = vmul.f32 %v739, %v542
        %v741 = vmul.f32 %v740, %v739
        %v742 = vmul.f32 0.5, %v741
        %v743 = vsub.f32 1.5, %v742
        %v744 = vmul.f32 %v739, %v743
        %v745 = vmul.f32 %v542, %v744
        %vm746 = vcmp.eq.f32.partialorder %v542, inf
        %v747 = vsel %vm746, %v542, %v745
        %vm748 = vcmp.eq.f32.partialorder %v542, 0.0
        %v749 = vand.u32 %v542, 2147483648
        %v750 = vsel %vm748, %v749, %v747
        %v751 = vrsqrt.pop %v543
        %v752 = vmul.f32 %v751, %v543
        %v753 = vmul.f32 %v752, %v751
        %v754 = vmul.f32 0.5, %v753
        %v755 = vsub.f32 1.5, %v754
        %v756 = vmul.f32 %v751, %v755
        %v757 = vmul.f32 %v543, %v756
        %vm758 = vcmp.eq.f32.partialorder %v543, inf
        %v759 = vsel %vm758, %v543, %v757
        %vm760 = vcmp.eq.f32.partialorder %v543, 0.0
        %v761 = vand.u32 %v543, 2147483648
        %v762 = vsel %vm760, %v761, %v759
        %v763 = vrsqrt.pop %v544
        %v764 = vmul.f32 %v763, %v544
        %v765 = vmul.f32 %v764, %v763
        %v766 = vmul.f32 0.5, %v765
        %v767 = vsub.f32 1.5, %v766
        %v768 = vmul.f32 %v763, %v767
        %v769 = vmul.f32 %v544, %v768
        %vm770 = vcmp.eq.f32.partialorder %v544, inf
        %v771 = vsel %vm770, %v544, %v769
        %vm772 = vcmp.eq.f32.partialorder %v544, 0.0
        %v773 = vand.u32 %v544, 2147483648
        %v774 = vsel %vm772, %v773, %v771
        %v775 = vrsqrt.pop %v545
        %v776 = vmul.f32 %v775, %v545
        %v777 = vmul.f32 %v776, %v775
        %v778 = vmul.f32 0.5, %v777
        %v779 = vsub.f32 1.5, %v778
        %v780 = vmul.f32 %v775, %v779
        %v781 = vmul.f32 %v545, %v780
        %vm782 = vcmp.eq.f32.partialorder %v545, inf
        %v783 = vsel %vm782, %v545, %v781
        %vm784 = vcmp.eq.f32.partialorder %v545, 0.0
        %v785 = vand.u32 %v545, 2147483648
        %v786 = vsel %vm784, %v785, %v783
        %v787 = vrsqrt.pop %v546
        %v788 = vmul.f32 %v787, %v546
        %v789 = vmul.f32 %v788, %v787
        %v790 = vmul.f32 0.5, %v789
        %v791 = vsub.f32 1.5, %v790
        %v792 = vmul.f32 %v787, %v791
        %v793 = vmul.f32 %v546, %v792
        %vm794 = vcmp.eq.f32.partialorder %v546, inf
        %v795 = vsel %vm794, %v546, %v793
        %vm796 = vcmp.eq.f32.partialorder %v546, 0.0
        %v797 = vand.u32 %v546, 2147483648
        %v798 = vsel %vm796, %v797, %v795
        %v799 = vrsqrt.pop %v547
        %v800 = vmul.f32 %v799, %v547
        %v801 = vmul.f32 %v800, %v799
        %v802 = vmul.f32 0.5, %v801
        %v803 = vsub.f32 1.5, %v802
        %v804 = vmul.f32 %v799, %v803
        %v805 = vmul.f32 %v547, %v804
        %vm806 = vcmp.eq.f32.partialorder %v547, inf
        %v807 = vsel %vm806, %v547, %v805
        %vm808 = vcmp.eq.f32.partialorder %v547, 0.0
        %v809 = vand.u32 %v547, 2147483648
        %v810 = vsel %vm808, %v809, %v807
        %v811 = vrsqrt.pop %v548
        %v812 = vmul.f32 %v811, %v548
        %v813 = vmul.f32 %v812, %v811
        %v814 = vmul.f32 0.5, %v813
        %v815 = vsub.f32 1.5, %v814
        %v816 = vmul.f32 %v811, %v815
        %v817 = vmul.f32 %v548, %v816
        %vm818 = vcmp.eq.f32.partialorder %v548, inf
        %v819 = vsel %vm818, %v548, %v817
        %vm820 = vcmp.eq.f32.partialorder %v548, 0.0
        %v821 = vand.u32 %v548, 2147483648
        %v822 = vsel %vm820, %v821, %v819
        %v823 = vrsqrt.pop %v549
        %v824 = vmul.f32 %v823, %v549
        %v825 = vmul.f32 %v824, %v823
        %v826 = vmul.f32 0.5, %v825
        %v827 = vsub.f32 1.5, %v826
        %v828 = vmul.f32 %v823, %v827
        %v829 = vmul.f32 %v549, %v828
        %vm830 = vcmp.eq.f32.partialorder %v549, inf
        %v831 = vsel %vm830, %v549, %v829
        %vm832 = vcmp.eq.f32.partialorder %v549, 0.0
        %v833 = vand.u32 %v549, 2147483648
        %v834 = vsel %vm832, %v833, %v831
        %v835 = vrsqrt.pop %v550
        %v836 = vmul.f32 %v835, %v550
        %v837 = vmul.f32 %v836, %v835
        %v838 = vmul.f32 0.5, %v837
        %v839 = vsub.f32 1.5, %v838
        %v840 = vmul.f32 %v835, %v839
        %v841 = vmul.f32 %v550, %v840
        %vm842 = vcmp.eq.f32.partialorder %v550, inf
        %v843 = vsel %vm842, %v550, %v841
        %vm844 = vcmp.eq.f32.partialorder %v550, 0.0
        %v845 = vand.u32 %v550, 2147483648
        %v846 = vsel %vm844, %v845, %v843
        %v847 = vrsqrt.pop %v551
        %v848 = vmul.f32 %v847, %v551
        %v849 = vmul.f32 %v848, %v847
        %v850 = vmul.f32 0.5, %v849
        %v851 = vsub.f32 1.5, %v850
        %v852 = vmul.f32 %v847, %v851
        %v853 = vmul.f32 %v551, %v852
        %vm854 = vcmp.eq.f32.partialorder %v551, inf
        %v855 = vsel %vm854, %v551, %v853
        %vm856 = vcmp.eq.f32.partialorder %v551, 0.0
        %v857 = vand.u32 %v551, 2147483648
        %v858 = vsel %vm856, %v857, %v855
        %v859 = vrsqrt.pop %v552
        %v860 = vmul.f32 %v859, %v552
        %v861 = vmul.f32 %v860, %v859
        %v862 = vmul.f32 0.5, %v861
        %v863 = vsub.f32 1.5, %v862
        %v864 = vmul.f32 %v859, %v863
        %v865 = vmul.f32 %v552, %v864
        %vm866 = vcmp.eq.f32.partialorder %v552, inf
        %v867 = vsel %vm866, %v552, %v865
        %vm868 = vcmp.eq.f32.partialorder %v552, 0.0
        %v869 = vand.u32 %v552, 2147483648
        %v870 = vsel %vm868, %v869, %v867
        %v871 = vrsqrt.pop %v553
        %v872 = vmul.f32 %v871, %v553
        %v873 = vmul.f32 %v872, %v871
        %v874 = vmul.f32 0.5, %v873
        %v875 = vsub.f32 1.5, %v874
        %v876 = vmul.f32 %v871, %v875
        %v877 = vmul.f32 %v553, %v876
        %vm878 = vcmp.eq.f32.partialorder %v553, inf
        %v879 = vsel %vm878, %v553, %v877
        %vm880 = vcmp.eq.f32.partialorder %v553, 0.0
        %v881 = vand.u32 %v553, 2147483648
        %v882 = vsel %vm880, %v881, %v879
        %v883 = vrsqrt.pop %v554
        %v884 = vmul.f32 %v883, %v554
        %v885 = vmul.f32 %v884, %v883
        %v886 = vmul.f32 0.5, %v885
        %v887 = vsub.f32 1.5, %v886
        %v888 = vmul.f32 %v883, %v887
        %v889 = vmul.f32 %v554, %v888
        %vm890 = vcmp.eq.f32.partialorder %v554, inf
        %v891 = vsel %vm890, %v554, %v889
        %vm892 = vcmp.eq.f32.partialorder %v554, 0.0
        %v893 = vand.u32 %v554, 2147483648
        %v894 = vsel %vm892, %v893, %v891
        %v895 = vrsqrt.pop %v555
        %v896 = vmul.f32 %v895, %v555
        %v897 = vmul.f32 %v896, %v895
        %v898 = vmul.f32 0.5, %v897
        %v899 = vsub.f32 1.5, %v898
        %v900 = vmul.f32 %v895, %v899
        %v901 = vmul.f32 %v555, %v900
        %vm902 = vcmp.eq.f32.partialorder %v555, inf
        %v903 = vsel %vm902, %v555, %v901
        %vm904 = vcmp.eq.f32.partialorder %v555, 0.0
        %v905 = vand.u32 %v555, 2147483648
        %v906 = vsel %vm904, %v905, %v903
        %v907 = vrsqrt.pop %v556
        %v908 = vmul.f32 %v907, %v556
        %v909 = vmul.f32 %v908, %v907
        %v910 = vmul.f32 0.5, %v909
        %v911 = vsub.f32 1.5, %v910
        %v912 = vmul.f32 %v907, %v911
        %v913 = vmul.f32 %v556, %v912
        %vm914 = vcmp.eq.f32.partialorder %v556, inf
        %v915 = vsel %vm914, %v556, %v913
        %vm916 = vcmp.eq.f32.partialorder %v556, 0.0
        %v917 = vand.u32 %v556, 2147483648
        %v918 = vsel %vm916, %v917, %v915
        %v919 = vrsqrt.pop %v557
        %v920 = vmul.f32 %v919, %v557
        %v921 = vmul.f32 %v920, %v919
        %v922 = vmul.f32 0.5, %v921
        %v923 = vsub.f32 1.5, %v922
        %v924 = vmul.f32 %v919, %v923
        %v925 = vmul.f32 %v557, %v924
        %vm926 = vcmp.eq.f32.partialorder %v557, inf
        %v927 = vsel %vm926, %v557, %v925
        %vm928 = vcmp.eq.f32.partialorder %v557, 0.0
        %v929 = vand.u32 %v557, 2147483648
        %v930 = vsel %vm928, %v929, %v927
        %v931 = vrsqrt.pop %v558
        %v932 = vmul.f32 %v931, %v558
        %v933 = vmul.f32 %v932, %v931
        %v934 = vmul.f32 0.5, %v933
        %v935 = vsub.f32 1.5, %v934
        %v936 = vmul.f32 %v931, %v935
        %v937 = vmul.f32 %v558, %v936
        %vm938 = vcmp.eq.f32.partialorder %v558, inf
        %v939 = vsel %vm938, %v558, %v937
        %vm940 = vcmp.eq.f32.partialorder %v558, 0.0
        %v941 = vand.u32 %v558, 2147483648
        %v942 = vsel %vm940, %v941, %v939
        %v943 = vadd.f32 %v570, 1e-06
        %v944 = vadd.f32 %v582, 1e-06
        %v945 = vadd.f32 %v594, 1e-06
        %v946 = vadd.f32 %v606, 1e-06
        %v947 = vadd.f32 %v618, 1e-06
        %v948 = vadd.f32 %v630, 1e-06
        %v949 = vadd.f32 %v642, 1e-06
        %v950 = vadd.f32 %v654, 1e-06
        %v951 = vadd.f32 %v666, 1e-06
        %v952 = vadd.f32 %v678, 1e-06
        %v953 = vadd.f32 %v690, 1e-06
        %v954 = vadd.f32 %v702, 1e-06
        %v955 = vadd.f32 %v714, 1e-06
        %v956 = vadd.f32 %v726, 1e-06
        %v957 = vadd.f32 %v738, 1e-06
        %v958 = vadd.f32 %v750, 1e-06
        %v959 = vadd.f32 %v762, 1e-06
        %v960 = vadd.f32 %v774, 1e-06
        %v961 = vadd.f32 %v786, 1e-06
        %v962 = vadd.f32 %v798, 1e-06
        %v963 = vadd.f32 %v810, 1e-06
        %v964 = vadd.f32 %v822, 1e-06
        %v965 = vadd.f32 %v834, 1e-06
        %v966 = vadd.f32 %v846, 1e-06
        %v967 = vadd.f32 %v858, 1e-06
        %v968 = vadd.f32 %v870, 1e-06
        %v969 = vadd.f32 %v882, 1e-06
        %v970 = vadd.f32 %v894, 1e-06
        %v971 = vadd.f32 %v906, 1e-06
        %v972 = vadd.f32 %v918, 1e-06
        %v973 = vadd.f32 %v930, 1e-06
        %v974 = vadd.f32 %v942, 1e-06
        %v975 = vrcp.pop %v943
        %v976 = vrcp.pop %v944
        %v977 = vrcp.pop %v945
        %v978 = vrcp.pop %v946
        %v979 = vrcp.pop %v947
        %v980 = vrcp.pop %v948
        %v981 = vrcp.pop %v949
        %v982 = vrcp.pop %v950
        %v983 = vrcp.pop %v951
        %v984 = vrcp.pop %v952
        %v985 = vrcp.pop %v953
        %v986 = vrcp.pop %v954
        %v987 = vrcp.pop %v955
        %v988 = vrcp.pop %v956
        %v989 = vrcp.pop %v957
        %v990 = vrcp.pop %v958
        %v991 = vrcp.pop %v959
        %v992 = vrcp.pop %v960
        %v993 = vrcp.pop %v961
        %v994 = vrcp.pop %v962
        %v995 = vrcp.pop %v963
        %v996 = vrcp.pop %v964
        %v997 = vrcp.pop %v965
        %v998 = vrcp.pop %v966
        %v999 = vrcp.pop %v967
        %v1000 = vrcp.pop %v968
        %v1001 = vrcp.pop %v969
        %v1002 = vrcp.pop %v970
        %v1003 = vrcp.pop %v971
        %v1004 = vrcp.pop %v972
        %v1005 = vrcp.pop %v973
        %v1006 = vrcp.pop %v974
        %v1007 = vmul.f32 %v399, %v975
        %v1008 = vmul.f32 %v400, %v976
        %v1009 = vmul.f32 %v401, %v977
        %v1010 = vmul.f32 %v402, %v978
        %v1011 = vmul.f32 %v403, %v979
        %v1012 = vmul.f32 %v404, %v980
        %v1013 = vmul.f32 %v405, %v981
        %v1014 = vmul.f32 %v406, %v982
        %v1015 = vmul.f32 %v407, %v983
        %v1016 = vmul.f32 %v408, %v984
        %v1017 = vmul.f32 %v409, %v985
        %v1018 = vmul.f32 %v410, %v986
        %v1019 = vmul.f32 %v411, %v987
        %v1020 = vmul.f32 %v412, %v988
        %v1021 = vmul.f32 %v413, %v989
        %v1022 = vmul.f32 %v414, %v990
        %v1023 = vmul.f32 %v415, %v991
        %v1024 = vmul.f32 %v416, %v992
        %v1025 = vmul.f32 %v417, %v993
        %v1026 = vmul.f32 %v418, %v994
        %v1027 = vmul.f32 %v419, %v995
        %v1028 = vmul.f32 %v420, %v996
        %v1029 = vmul.f32 %v421, %v997
        %v1030 = vmul.f32 %v422, %v998
        %v1031 = vmul.f32 %v423, %v999
        %v1032 = vmul.f32 %v424, %v1000
        %v1033 = vmul.f32 %v425, %v1001
        %v1034 = vmul.f32 %v426, %v1002
        %v1035 = vmul.f32 %v427, %v1003
        %v1036 = vmul.f32 %v428, %v1004
        %v1037 = vmul.f32 %v429, %v1005
        %v1038 = vmul.f32 %v430, %v1006
        %v1039 = vld [vmem:[%s3] sm:$0x1]
        %v1041 = vperm.slane %v1039, 0
        %v1043 = vmul.f32 %v1007, %v1041
        %v1044 = vmul.f32 %v1008, %v1041
        %v1045 = vmul.f32 %v1009, %v1041
        %v1046 = vmul.f32 %v1010, %v1041
        %v1047 = vmul.f32 %v1011, %v1041
        %v1048 = vmul.f32 %v1012, %v1041
        %v1049 = vmul.f32 %v1013, %v1041
        %v1050 = vmul.f32 %v1014, %v1041
        %v1051 = vmul.f32 %v1015, %v1041
        %v1052 = vmul.f32 %v1016, %v1041
        %v1053 = vmul.f32 %v1017, %v1041
        %v1054 = vmul.f32 %v1018, %v1041
        %v1055 = vmul.f32 %v1019, %v1041
        %v1056 = vmul.f32 %v1020, %v1041
        %v1057 = vmul.f32 %v1021, %v1041
        %v1058 = vmul.f32 %v1022, %v1041
        %v1059 = vmul.f32 %v1023, %v1041
        %v1060 = vmul.f32 %v1024, %v1041
        %v1061 = vmul.f32 %v1025, %v1041
        %v1062 = vmul.f32 %v1026, %v1041
        %v1063 = vmul.f32 %v1027, %v1041
        %v1064 = vmul.f32 %v1028, %v1041
        %v1065 = vmul.f32 %v1029, %v1041
        %v1066 = vmul.f32 %v1030, %v1041
        %v1067 = vmul.f32 %v1031, %v1041
        %v1068 = vmul.f32 %v1032, %v1041
        %v1069 = vmul.f32 %v1033, %v1041
        %v1070 = vmul.f32 %v1034, %v1041
        %v1071 = vmul.f32 %v1035, %v1041
        %v1072 = vmul.f32 %v1036, %v1041
        %v1073 = vmul.f32 %v1037, %v1041
        %v1074 = vmul.f32 %v1038, %v1041
        %v1075 = vld [vmem:[%s4] sm:$0x1]
        %v1077 = vperm.slane %v1075, 0
        %v1079 = vadd.f32 %v1043, %v1077
        %v1080 = vadd.f32 %v1044, %v1077
        %v1081 = vadd.f32 %v1045, %v1077
        %v1082 = vadd.f32 %v1046, %v1077
        %v1083 = vadd.f32 %v1047, %v1077
        %v1084 = vadd.f32 %v1048, %v1077
        %v1085 = vadd.f32 %v1049, %v1077
        %v1086 = vadd.f32 %v1050, %v1077
        %v1087 = vadd.f32 %v1051, %v1077
        %v1088 = vadd.f32 %v1052, %v1077
        %v1089 = vadd.f32 %v1053, %v1077
        %v1090 = vadd.f32 %v1054, %v1077
        %v1091 = vadd.f32 %v1055, %v1077
        %v1092 = vadd.f32 %v1056, %v1077
        %v1093 = vadd.f32 %v1057, %v1077
        %v1094 = vadd.f32 %v1058, %v1077
        %v1095 = vadd.f32 %v1059, %v1077
        %v1096 = vadd.f32 %v1060, %v1077
        %v1097 = vadd.f32 %v1061, %v1077
        %v1098 = vadd.f32 %v1062, %v1077
        %v1099 = vadd.f32 %v1063, %v1077
        %v1100 = vadd.f32 %v1064, %v1077
        %v1101 = vadd.f32 %v1065, %v1077
        %v1102 = vadd.f32 %v1066, %v1077
        %v1103 = vadd.f32 %v1067, %v1077
        %v1104 = vadd.f32 %v1068, %v1077
        %v1105 = vadd.f32 %v1069, %v1077
        %v1106 = vadd.f32 %v1070, %v1077
        %v1107 = vadd.f32 %v1071, %v1077
        %v1108 = vadd.f32 %v1072, %v1077
        %v1109 = vadd.f32 %v1073, %v1077
        %v1110 = vadd.f32 %v1074, %v1077
        %v1111 = vpack.c.bf16 %v1080, %v1079
        %v1112 = vpack.c.bf16 %v1082, %v1081
        %v1113 = vpack.c.bf16 %v1084, %v1083
        %v1114 = vpack.c.bf16 %v1086, %v1085
        %v1115 = vpack.c.bf16 %v1088, %v1087
        %v1116 = vpack.c.bf16 %v1090, %v1089
        %v1117 = vpack.c.bf16 %v1092, %v1091
        %v1118 = vpack.c.bf16 %v1094, %v1093
        %v1119 = vpack.c.bf16 %v1096, %v1095
        %v1120 = vpack.c.bf16 %v1098, %v1097
        %v1121 = vpack.c.bf16 %v1100, %v1099
        %v1122 = vpack.c.bf16 %v1102, %v1101
        %v1123 = vpack.c.bf16 %v1104, %v1103
        %v1124 = vpack.c.bf16 %v1106, %v1105
        %v1125 = vpack.c.bf16 %v1108, %v1107
        %v1126 = vpack.c.bf16 %v1110, %v1109
        %v1127 = vld [vmem:[#allocation5] sm:$0xf]
        %v1128 = vld [vmem:[#allocation5 + $0x4] sm:$0xf]
        %v1129 = vld [vmem:[#allocation5 + $0x8] sm:$0xf]
        %v1130 = vld [vmem:[#allocation5 + $0xc] sm:$0xf]
        %v1131 = vld [vmem:[#allocation5 + $0x10] sm:$0xf]
        %v1132 = vld [vmem:[#allocation5 + $0x14] sm:$0xf]
        %v1133 = vld [vmem:[#allocation5 + $0x18] sm:$0xf]
        %v1134 = vld [vmem:[#allocation5 + $0x1c] sm:$0xf]
        %v1135 = vld [vmem:[#allocation5 + $0x20] sm:$0xf]
        %v1136 = vld [vmem:[#allocation5 + $0x24] sm:$0xf]
        %v1137 = vld [vmem:[#allocation5 + $0x28] sm:$0xf]
        %v1138 = vld [vmem:[#allocation5 + $0x2c] sm:$0xf]
        %v1139 = vld [vmem:[#allocation5 + $0x30] sm:$0xf]
        %v1140 = vld [vmem:[#allocation5 + $0x34] sm:$0xf]
        %v1141 = vld [vmem:[#allocation5 + $0x38] sm:$0xf]
        %v1142 = vld [vmem:[#allocation5 + $0x3c] sm:$0xf]
        %v1143 = vld [vmem:[%s2] sm:$0x1]
        %v1145 = vperm.slane %v1143, 0
        %v1163 = vunpack.c.l.b16 %v1127
        %v1164 = vunpack.c.l.b16 %v1128
        %v1165 = vunpack.c.l.b16 %v1129
        %v1166 = vunpack.c.l.b16 %v1130
        %v1167 = vunpack.c.l.b16 %v1131
        %v1168 = vunpack.c.l.b16 %v1132
        %v1169 = vunpack.c.l.b16 %v1133
        %v1170 = vunpack.c.l.b16 %v1134
        %v1171 = vunpack.c.l.b16 %v1135
        %v1172 = vunpack.c.l.b16 %v1136
        %v1173 = vunpack.c.l.b16 %v1137
        %v1174 = vunpack.c.l.b16 %v1138
        %v1175 = vunpack.c.l.b16 %v1139
        %v1176 = vunpack.c.l.b16 %v1140
        %v1177 = vunpack.c.l.b16 %v1141
        %v1178 = vunpack.c.l.b16 %v1142
        %v1179 = vpack.c.b16 %v1164, %v1163
        %v1180 = vpack.c.b16 %v1166, %v1165
        %v1181 = vpack.c.b16 %v1168, %v1167
        %v1182 = vpack.c.b16 %v1170, %v1169
        %v1183 = vpack.c.b16 %v1172, %v1171
        %v1184 = vpack.c.b16 %v1174, %v1173
        %v1185 = vpack.c.b16 %v1176, %v1175
        %v1186 = vpack.c.b16 %v1178, %v1177
        %1195 = vmatpush.bf16.msra.mxu0 %v1186
        %1196 = vmatpush.bf16.msra.mxu0 %v1185
        %1197 = vmatpush.bf16.msra.mxu0 %v1184
        %1198 = vmatpush.bf16.msra.mxu0 %v1183
        %1199 = vmatpush.bf16.msra.mxu0 %v1182
        %1200 = vmatpush.bf16.msra.mxu0 %v1181
        %1201 = vmatpush.bf16.msra.mxu0 %v1180
        %1202 = vmatpush.bf16.msra.mxu0 %v1179
        %1203 = vmatmul.bf16.gmra.mxu0 %v1111
        %v1204 = vpop.f32.mrf.mxu0
        %v1205 = vadd.f32 %v1145, %v1204
        %v1206 = vpop.f32.mrf.mxu0
        %v1207 = vadd.f32 %v1145, %v1206
        %1208 = vmatmul.bf16.gmra.mxu0 %v1112
        %v1209 = vpop.f32.mrf.mxu0
        %v1210 = vadd.f32 %v1145, %v1209
        %v1211 = vpop.f32.mrf.mxu0
        %v1212 = vadd.f32 %v1145, %v1211
        %1213 = vmatmul.bf16.gmra.mxu0 %v1113
        %v1214 = vpop.f32.mrf.mxu0
        %v1215 = vadd.f32 %v1145, %v1214
        %v1216 = vpop.f32.mrf.mxu0
        %v1217 = vadd.f32 %v1145, %v1216
        %1218 = vmatmul.bf16.gmra.mxu0 %v1114
        %v1219 = vpop.f32.mrf.mxu0
        %v1220 = vadd.f32 %v1145, %v1219
        %v1221 = vpop.f32.mrf.mxu0
        %v1222 = vadd.f32 %v1145, %v1221
        %1223 = vmatmul.bf16.gmra.mxu0 %v1115
        %v1224 = vpop.f32.mrf.mxu0
        %v1225 = vadd.f32 %v1145, %v1224
        %v1226 = vpop.f32.mrf.mxu0
        %v1227 = vadd.f32 %v1145, %v1226
        %1228 = vmatmul.bf16.gmra.mxu0 %v1116
        %v1229 = vpop.f32.mrf.mxu0
        %v1230 = vadd.f32 %v1145, %v1229
        %v1231 = vpop.f32.mrf.mxu0
        %v1232 = vadd.f32 %v1145, %v1231
        %1233 = vmatmul.bf16.gmra.mxu0 %v1117
        %v1234 = vpop.f32.mrf.mxu0
        %v1235 = vadd.f32 %v1145, %v1234
        %v1236 = vpop.f32.mrf.mxu0
        %v1237 = vadd.f32 %v1145, %v1236
        %1238 = vmatmul.bf16.gmra.mxu0 %v1118
        %v1239 = vpop.f32.mrf.mxu0
        %v1240 = vadd.f32 %v1145, %v1239
        %v1241 = vpop.f32.mrf.mxu0
        %v1242 = vadd.f32 %v1145, %v1241
        %1243 = vmatmul.bf16.gmra.mxu0 %v1119
        %v1244 = vpop.f32.mrf.mxu0
        %v1245 = vadd.f32 %v1145, %v1244
        %v1246 = vpop.f32.mrf.mxu0
        %v1247 = vadd.f32 %v1145, %v1246
        %1248 = vmatmul.bf16.gmra.mxu0 %v1120
        %v1249 = vpop.f32.mrf.mxu0
        %v1250 = vadd.f32 %v1145, %v1249
        %v1251 = vpop.f32.mrf.mxu0
        %v1252 = vadd.f32 %v1145, %v1251
        %1253 = vmatmul.bf16.gmra.mxu0 %v1121
        %v1254 = vpop.f32.mrf.mxu0
        %v1255 = vadd.f32 %v1145, %v1254
        %v1256 = vpop.f32.mrf.mxu0
        %v1257 = vadd.f32 %v1145, %v1256
        %1258 = vmatmul.bf16.gmra.mxu0 %v1122
        %v1259 = vpop.f32.mrf.mxu0
        %v1260 = vadd.f32 %v1145, %v1259
        %v1261 = vpop.f32.mrf.mxu0
        %v1262 = vadd.f32 %v1145, %v1261
        %1263 = vmatmul.bf16.gmra.mxu0 %v1123
        %v1264 = vpop.f32.mrf.mxu0
        %v1265 = vadd.f32 %v1145, %v1264
        %v1266 = vpop.f32.mrf.mxu0
        %v1267 = vadd.f32 %v1145, %v1266
        %1268 = vmatmul.bf16.gmra.mxu0 %v1124
        %v1269 = vpop.f32.mrf.mxu0
        %v1270 = vadd.f32 %v1145, %v1269
        %v1271 = vpop.f32.mrf.mxu0
        %v1272 = vadd.f32 %v1145, %v1271
        %1273 = vmatmul.bf16.gmra.mxu0 %v1125
        %v1274 = vpop.f32.mrf.mxu0
        %v1275 = vadd.f32 %v1145, %v1274
        %v1276 = vpop.f32.mrf.mxu0
        %v1277 = vadd.f32 %v1145, %v1276
        %1278 = vmatmul.bf16.gmra.mxu0 %v1126
        %v1279 = vpop.f32.mrf.mxu0
        %v1280 = vadd.f32 %v1145, %v1279
        %v1281 = vpop.f32.mrf.mxu0
        %v1282 = vadd.f32 %v1145, %v1281
        %1283 = vdwg.mxu0
        %v1284 = vadd.f32 %v264, %v1205
        %v1285 = vadd.f32 %v265, %v1207
        %v1286 = vadd.f32 %v266, %v1210
        %v1287 = vadd.f32 %v267, %v1212
        %v1288 = vadd.f32 %v268, %v1215
        %v1289 = vadd.f32 %v269, %v1217
        %v1290 = vadd.f32 %v270, %v1220
        %v1291 = vadd.f32 %v271, %v1222
        %v1292 = vadd.f32 %v272, %v1225
        %v1293 = vadd.f32 %v273, %v1227
        %v1294 = vadd.f32 %v274, %v1230
        %v1295 = vadd.f32 %v275, %v1232
        %v1296 = vadd.f32 %v276, %v1235
        %v1297 = vadd.f32 %v277, %v1237
        %v1298 = vadd.f32 %v278, %v1240
        %v1299 = vadd.f32 %v279, %v1242
        %v1300 = vadd.f32 %v280, %v1245
        %v1301 = vadd.f32 %v281, %v1247
        %v1302 = vadd.f32 %v282, %v1250
        %v1303 = vadd.f32 %v283, %v1252
        %v1304 = vadd.f32 %v284, %v1255
        %v1305 = vadd.f32 %v285, %v1257
        %v1306 = vadd.f32 %v286, %v1260
        %v1307 = vadd.f32 %v287, %v1262
        %v1308 = vadd.f32 %v288, %v1265
        %v1309 = vadd.f32 %v289, %v1267
        %v1310 = vadd.f32 %v290, %v1270
        %v1311 = vadd.f32 %v291, %v1272
        %v1312 = vadd.f32 %v292, %v1275
        %v1313 = vadd.f32 %v293, %v1277
        %v1314 = vadd.f32 %v294, %v1280
        %v1315 = vadd.f32 %v295, %v1282
        %1316 = vst [vmem:[%s261] sm:$0xff] %v1284
        %1317 = vst [vmem:[%s261 + $0x8] sm:$0xff] %v1285
        %1318 = vst [vmem:[%s261 + $0x10] sm:$0xff] %v1286
        %1319 = vst [vmem:[%s261 + $0x18] sm:$0xff] %v1287
        %1320 = vst [vmem:[%s261 + $0x20] sm:$0xff] %v1288
        %1321 = vst [vmem:[%s261 + $0x28] sm:$0xff] %v1289
        %1322 = vst [vmem:[%s261 + $0x30] sm:$0xff] %v1290
        %1323 = vst [vmem:[%s261 + $0x38] sm:$0xff] %v1291
        %1324 = vst [vmem:[%s261 + $0x40] sm:$0xff] %v1292
        %1325 = vst [vmem:[%s261 + $0x48] sm:$0xff] %v1293
        %1326 = vst [vmem:[%s261 + $0x50] sm:$0xff] %v1294
        %1327 = vst [vmem:[%s261 + $0x58] sm:$0xff] %v1295
        %1328 = vst [vmem:[%s261 + $0x60] sm:$0xff] %v1296
        %1329 = vst [vmem:[%s261 + $0x68] sm:$0xff] %v1297
        %1330 = vst [vmem:[%s261 + $0x70] sm:$0xff] %v1298
        %1331 = vst [vmem:[%s261 + $0x78] sm:$0xff] %v1299
        %1332 = vst [vmem:[%s261 + $0x80] sm:$0xff] %v1300
        %1333 = vst [vmem:[%s261 + $0x88] sm:$0xff] %v1301
        %1334 = vst [vmem:[%s261 + $0x90] sm:$0xff] %v1302
        %1335 = vst [vmem:[%s261 + $0x98] sm:$0xff] %v1303
        %1336 = vst [vmem:[%s261 + $0xa0] sm:$0xff] %v1304
        %1337 = vst [vmem:[%s261 + $0xa8] sm:$0xff] %v1305
        %1338 = vst [vmem:[%s261 + $0xb0] sm:$0xff] %v1306
        %1339 = vst [vmem:[%s261 + $0xb8] sm:$0xff] %v1307
        %1340 = vst [vmem:[%s261 + $0xc0] sm:$0xff] %v1308
        %1341 = vst [vmem:[%s261 + $0xc8] sm:$0xff] %v1309
        %1342 = vst [vmem:[%s261 + $0xd0] sm:$0xff] %v1310
        %1343 = vst [vmem:[%s261 + $0xd8] sm:$0xff] %v1311
        %1344 = vst [vmem:[%s261 + $0xe0] sm:$0xff] %v1312
        %1345 = vst [vmem:[%s261 + $0xe8] sm:$0xff] %v1313
        %1346 = vst [vmem:[%s261 + $0xf0] sm:$0xff] %v1314
        %1347 = vst [vmem:[%s261 + $0xf8] sm:$0xff] %v1315
        %s1348 = sand.u32 %s141, 1
        %s1349 = scalar_lea.sflag [#allocation4], %s1348
        %s1350 = sand.u32 %s141, 1
        %s1351 = smul.addr %s1350, 256
        %s1352 = scalar_lea.vmem [#allocation7], %s1351
        // Predicated region
        $region49: #{tpu_custom_call.1} parent=39 // pred_check
          %p1353 = pneg %p151
        $region50: #{tpu_custom_call.1} parent=39 // pred_check_branch
          %1355 = sbr.rel (%p1353) target = $region52
        $region51: #{tpu_custom_call.1} parent=39 // pred_region
          %s1356 = smul.u32 32, %s23
          %1358 = vsyncadd %s1349, 0
          %s1359 = smul.addr %s1356, 8
          %s1360 = scalar_lea.hbm %s5, %s1359
          %s1361 = sshll.u32 %s1352, 4
          %s1362 = int_to_ptr.vmem [resolvable:$true] %s1361
          %s1363 = sshll.u32 %s1360, 4
          %s1364 = int_to_ptr.hbm [resolvable:$true] %s1363
          %1369 = dma.vmem_to_hbm [thread:$0]  %s1362, 4096, %s1364, %s1349, 128, 128, 8
        $region52: #{tpu_custom_call.1} parent=39 // pred_fallthru
          _
      $region40: #{tpu_custom_call.1} parent=5 // pred_fallthru
        _
      %p1370 = scmp.le.s32.totalorder 2, %s18
      // Predicated region
      $region53: #{tpu_custom_call.1} parent=5 // pred_check
        %p1371 = pneg %p1370
      $region54: #{tpu_custom_call.1} parent=5 // pred_check_branch
        %1373 = sbr.rel (%p1371) target = $region56
      $region55: #{tpu_custom_call.1} parent=5 // pred_region
        %s1374 = ssub.s32 %s18, 2
        // Predicated region
        $region57: #{tpu_custom_call.1} parent=55 // pred_check
          %p1375 = pneg %p157
        $region58: #{tpu_custom_call.1} parent=55 // pred_check_branch
          %1377 = sbr.rel (%p1375) target = $region60
        $region59: #{tpu_custom_call.1} parent=55 // pred_region
          %s1378 = sand.u32 %s142, 1
          %s1379 = scalar_lea.sflag [#allocation4], %s1378
          %s1380 = sand.u32 %s142, 1
          %s1381 = smul.addr %s1380, 256
          %s1382 = scalar_lea.vmem [#allocation7], %s1381
          %1384 = dma.done %s1379, 4096
        $region60: #{tpu_custom_call.1} parent=55 // pred_fallthru
          _
      $region56: #{tpu_custom_call.1} parent=5 // pred_fallthru
        _
    $region6: #{tpu_custom_call.1} parent=1 // loop_footer
      %s22 = sadd.s32 1, %s18
    $region7: #{tpu_custom_call.1} parent=1 // loop_footer_branch
      %17 = sbr.rel target = $region3
    $region8: #{tpu_custom_call.1} parent=1 // loop_exit
      _
    %1385 = vsyncpa [#allocation3], 1
    %s1386 = scalar_lea.sflag [#allocation3], 1
    %1387 = vsyncpa %s1386, 1
    %1388 = vsyncpa [#allocation6], 1
    %1389 = vsyncpa [#allocation4], 1
    %s1390 = scalar_lea.sflag [#allocation4], 1
    %1391 = vsyncpa %s1390, 1

</llo_original>
